<compile_context>
chip_gen: v6e
topology: v6e:2x2x1
jax: 0.10.0
libtpu: 0.0.40
codegen_flags: <defaults>
</compile_context>

<pallas_src>
import functools

import jax
import jax.numpy as jnp
from jax.experimental import pallas as pl
from jax.experimental.pallas import tpu as pltpu

EPS = 1e-5
_LANE = 128
_SUB = 8
_TM_MAX = 512  # row-tile cap (used both for packing-time budget and runtime tiling)

# CompilerParams name differs across jax versions; resolve once.
_CompilerParams = getattr(pltpu, "CompilerParams", None) or getattr(
    pltpu, "TPUCompilerParams")


def _round_up(x, m):
    return (x + m - 1) // m * m


def _softplus(x):
    # matches F.softplus(x) (beta=1, threshold=20)
    return jnp.where(x > 20.0, x, jnp.log1p(jnp.exp(jnp.minimum(x, 20.0))))


def _vmem_limit_bytes():
    # Generation-aware scoped-VMEM budget: ~3/4 of physical capacity
    # (v7x: 64 MiB -> 48 MiB; v5e/v6e: 128 MiB -> 96 MiB). Conservative fallback.
    try:
        cap = pltpu.get_tpu_info().vmem_capacity_bytes
        return int(cap * 3 // 4)
    except Exception:
        return 48 * 1024 * 1024


def _compiler_params(**kw):
    kw.setdefault("vmem_limit_bytes", _vmem_limit_bytes())
    return _CompilerParams(**kw)


def _choose_feature_tile(nhid1, nfeat, out_bytes):
    """Largest feature tile (multiple of 128) whose per-step VMEM use fits budget."""
    budget = int(_vmem_limit_bytes() * 0.7)  # headroom for Pallas internals
    tm = _TM_MAX
    nfeat_min = _round_up(nfeat, _LANE)
    tn = _LANE
    cand = _LANE
    while cand <= min(nfeat_min, 4096):
        need = (2 * tm * nhid1 * 2                             # x block (bf16, 2 bufs)
                + 2 * (nhid1 * 3 * cand * 2 + 3 * cand * 4)    # packed w (bf16) + b (f32)
                + 2 * 3 * tm * cand * out_bytes                # three output tiles
                + tm * 3 * cand * 4)                           # f32 z intermediate
        if need <= budget:
            tn = cand
        cand += _LANE
    return tn


# -----------------------------------------------------------------------------
# One-time parameter packing (hoisted out of the per-call forward)
# -----------------------------------------------------------------------------
def pack_decoder_params(params, out_dtype=jnp.float32):
    """Pack decoder params once for the Pallas kernels.

    Head weights/biases are packed per feature tile as [ntiles, nhid1, 3*tn]
    (columns: [pi | disp | mean] for that tile) so each heads grid step is a
    single lane-dense MXU pass. Doing this per forward call would roughly
    double weight-side HBM traffic, so callers should pack once and reuse.
    """
    nhid1 = params["w1"].shape[1]
    nfeat = params["wpi"].shape[1]
    out_bytes = jnp.dtype(out_dtype).itemsize
    tn = _choose_feature_tile(nhid1, nfeat, out_bytes)
    ntiles = pl.cdiv(nfeat, tn)
    npad = ntiles * tn

    def tile_w(w):  # [nhid1, nfeat] -> [ntiles, nhid1, tn] (zero-padded columns)
        wp = jnp.pad(w, ((0, 0), (0, npad - nfeat)))
        return jnp.transpose(wp.reshape(nhid1, ntiles, tn), (1, 0, 2))

    def tile_b(b):  # [1, nfeat] -> [ntiles, 1, tn]
        bp = jnp.pad(b, ((0, 0), (0, npad - nfeat)))
        return jnp.transpose(bp.reshape(1, ntiles, tn), (1, 0, 2))

    w_heads = jnp.concatenate(
        [tile_w(params["wpi"]), tile_w(params["wd"]), tile_w(params["wm"])],
        axis=-1).astype(jnp.bfloat16)                   # [ntiles, nhid1, 3*tn]
    b_heads = jnp.concatenate(
        [tile_b(params["bpi"]), tile_b(params["bd"]), tile_b(params["bm"])],
        axis=-1).astype(jnp.float32)                    # [ntiles, 1, 3*tn]

    return {
        "w1": params["w1"].astype(jnp.bfloat16),        # bf16 MXU operand
        "b1": params["b1"].astype(jnp.float32),
        "gamma": params["gamma"].astype(jnp.float32),
        "beta": params["beta"].astype(jnp.float32),
        "w_heads": w_heads,
        "b_heads": b_heads,
    }


# -----------------------------------------------------------------------------
# Kernel 1: trunk  (Linear -> BatchNorm1d with batch stats -> ReLU)
# -----------------------------------------------------------------------------
def _trunk_kernel(emb_ref, w1_ref, b1_ref, gamma_ref, beta_ref, x_ref):
    # bf16 MXU operands, f32 accumulation; BN statistics / affine / ReLU in f32.
    emb = emb_ref[...].astype(jnp.bfloat16)
    h = jnp.dot(emb, w1_ref[...], preferred_element_type=jnp.float32) + b1_ref[...]
    n = h.shape[0]                       # exact batch: no padded rows to mask
    inv_n = 1.0 / float(n)
    mu = jnp.sum(h, axis=0, keepdims=True) * inv_n
    d = h - mu
    var = jnp.sum(d * d, axis=0, keepdims=True) * inv_n    # biased (PyTorch fwd)
    xhat = d * jax.lax.rsqrt(var + EPS)
    x_ref[...] = jnp.maximum(xhat * gamma_ref[...] + beta_ref[...],
                             0.0).astype(x_ref.dtype)      # bf16 for the heads


# -----------------------------------------------------------------------------
# Kernel 2: heads — one fused [nhid1, 3*TN] matmul per (row tile, feature tile)
# -----------------------------------------------------------------------------
def _heads_kernel(x_ref, w_ref, b_ref, pi_ref, disp_ref, mean_ref):
    tn = pi_ref.shape[-1]
    z = jnp.dot(x_ref[...], w_ref[...], preferred_element_type=jnp.float32) + b_ref[...]
    zpi = z[:, :tn]
    zd = z[:, tn:2 * tn]
    zm = z[:, 2 * tn:]
    # sigmoid as a single EUP tanh (heads are EUP-limited, not MXU-limited)
    pi_ref[...] = (0.5 * (jnp.tanh(0.5 * zpi) + 1.0)).astype(pi_ref.dtype)
    disp_ref[...] = jnp.clip(_softplus(zd), 1e-4, 1e4).astype(disp_ref.dtype)
    mean_ref[...] = jnp.clip(jnp.exp(zm), 1e-5, 1e6).astype(mean_ref.dtype)


# -----------------------------------------------------------------------------
# Wrapper
# -----------------------------------------------------------------------------
def decoder_forward(emb, packed, *, nfeat, out_dtype=jnp.float32):
    """emb: [N, nhid2] f32. packed: dict from pack_decoder_params. -> (pi, disp, mean)."""
    n = emb.shape[0]
    nhid1 = packed["w1"].shape[1]
    ntiles, _, tn3 = packed["w_heads"].shape
    tn = tn3 // 3

    # ---- call 1: trunk (single block; all trunk tensors are small) ----
    # TODO(synk): two-pass batch-tiled BN for very large batches (the whole-batch
    # block will not fit v7x's 64 MiB VMEM once n*nhid reaches tens of MiB).
    def full_spec(a):
        return pl.BlockSpec(a.shape, lambda *_: (0,) * a.ndim)

    trunk_args = (emb, packed["w1"], packed["b1"], packed["gamma"], packed["beta"])
    x = pl.pallas_call(
        _trunk_kernel,
        out_shape=jax.ShapeDtypeStruct((n, nhid1), jnp.bfloat16),
        in_specs=[full_spec(a) for a in trunk_args],
        out_specs=pl.BlockSpec((n, nhid1), lambda *_: (0, 0)),
        compiler_params=_compiler_params(),
    )(*trunk_args)

    # ---- call 2: heads, grid = (row tiles, feature tiles), both parallel ----
    tm = min(_round_up(n, _SUB), _TM_MAX)
    row_tiles = pl.cdiv(n, tm)
    feat_tiles = pl.cdiv(nfeat, tn)           # == ntiles

    # Exact output shapes: ragged edge blocks are masked on writeback, so no
    # post-call strip slices (which would roughly double output HBM traffic).
    out_shape = jax.ShapeDtypeStruct((n, nfeat), out_dtype)
    out_spec = pl.BlockSpec((tm, tn), lambda i, j: (i, j))

    out_bytes = jnp.dtype(out_dtype).itemsize
    cost = pl.CostEstimate(
        flops=2 * n * nhid1 * 3 * feat_tiles * tn,
        transcendentals=4 * n * feat_tiles * tn,
        bytes_accessed=(n * nhid1 * 2
                        + row_tiles * (packed["w_heads"].size * 2
                                       + packed["b_heads"].size * 4)
                        + 3 * n * nfeat * out_bytes),
    )

    pi, disp, mean = pl.pallas_call(
        _heads_kernel,
        out_shape=(out_shape, out_shape, out_shape),
        grid=(row_tiles, feat_tiles),
        in_specs=[
            pl.BlockSpec((tm, nhid1), lambda i, j: (i, 0)),               # x (resident over j)
            pl.BlockSpec((None, nhid1, 3 * tn), lambda i, j: (j, 0, 0)),  # packed head weights
            pl.BlockSpec((None, 1, 3 * tn), lambda i, j: (j, 0, 0)),      # packed head biases
        ],
        out_specs=(out_spec, out_spec, out_spec),
        compiler_params=_compiler_params(
            dimension_semantics=("parallel", "parallel")),
        cost_estimate=cost,
    )(x, packed["w_heads"], packed["b_heads"])

    return pi, disp, mean


# -----------------------------------------------------------------------------
# Params / reference / test
# -----------------------------------------------------------------------------
def init_params(key, nfeat, nhid1, nhid2):
    """Deterministic synthetic parameter init (matches PyTorch module shapes)."""
    ks = jax.random.split(key, 8)

    def lin(kw, kb, fan_in, fan_out):
        bound = 1.0 / jnp.sqrt(fan_in)
        w = jax.random.uniform(kw, (fan_in, fan_out), jnp.float32, -bound, bound)
        b = jax.random.uniform(kb, (1, fan_out), jnp.float32, -bound, bound)
        return w, b

    w1, b1 = lin(ks[0], ks[1], nhid2, nhid1)
    wpi, bpi = lin(ks[2], ks[3], nhid1, nfeat)
    wd, bd = lin(ks[4], ks[5], nhid1, nfeat)
    wm, bm = lin(ks[6], ks[7], nhid1, nfeat)
    return {
        "w1": w1, "b1": b1,
        "gamma": jnp.ones((1, nhid1), jnp.float32),   # BatchNorm1d affine weight
        "beta": jnp.zeros((1, nhid1), jnp.float32),   # BatchNorm1d affine bias
        "wpi": wpi, "bpi": bpi,
        "wd": wd, "bd": bd,
        "wm": wm, "bm": bm,
    }


def _reference(emb, p):
    h = emb @ p["w1"] + p["b1"]
    mu = h.mean(0, keepdims=True)
    var = ((h - mu) ** 2).mean(0, keepdims=True)
    x = jnp.maximum((h - mu) / jnp.sqrt(var + EPS) * p["gamma"] + p["beta"], 0.0)
    pi = jax.nn.sigmoid(x @ p["wpi"] + p["bpi"])
    disp = jnp.clip(_softplus(x @ p["wd"] + p["bd"]), 1e-4, 1e4)
    mean = jnp.clip(jnp.exp(x @ p["wm"] + p["bm"]), 1e-5, 1e6)
    return pi, disp, mean


if __name__ == "__main__":
    nfeat, nhid1, nhid2 = 16, 32, 32
    batch = 8

    key = jax.random.PRNGKey(0)
    k_emb, k_par = jax.random.split(key)
    emb = jax.random.normal(k_emb, (batch, nhid2), jnp.float32)
    params = init_params(k_par, nfeat, nhid1, nhid2)

    packed = pack_decoder_params(params)                      # one-time packing
    fwd = jax.jit(functools.partial(decoder_forward, nfeat=nfeat))
    pi, disp, mean = jax.block_until_ready(fwd(emb, packed))

    # sanity check against plain-JAX f32 reference; matmuls use bf16 operands
    # (f32 accumulation, f32 BN/activations) so tolerances are loosened.
    rpi, rdisp, rmean = _reference(emb, params)
    assert pi.shape == disp.shape == mean.shape == (batch, nfeat)
    assert jnp.allclose(pi, rpi, atol=2e-2, rtol=2e-2)
    assert jnp.allclose(disp, rdisp, atol=2e-2, rtol=2e-2)
    assert jnp.allclose(mean, rmean, atol=2e-2, rtol=2e-2)

    print("KERNEL_OK")
</pallas_src>

<mosaic_0001>
module attributes {stable_mosaic.version = 11 : i64} {
  func.func @_trunk_kernel(%arg0: memref<8x32xf32, #tpu.memory_space<vmem>>, %arg1: memref<32x32xbf16, #tpu.memory_space<vmem>>, %arg2: memref<1x32xf32, #tpu.memory_space<vmem>>, %arg3: memref<1x32xf32, #tpu.memory_space<vmem>>, %arg4: memref<1x32xf32, #tpu.memory_space<vmem>>, %arg5: memref<8x32xbf16, #tpu.memory_space<vmem>>) attributes {dimension_semantics = [], scalar_prefetch = 0 : i64, scratch_operands = 0 : i64, tpu.core_type = #tpu.core_type<tc>} {
    %c0 = arith.constant 0 : index
    %c0_0 = arith.constant 0 : index
    %0 = vector.load %arg0[%c0, %c0_0] : memref<8x32xf32, #tpu.memory_space<vmem>>, vector<8x32xf32>
    %1 = arith.truncf %0 : vector<8x32xf32> to vector<8x32xbf16>
    %c0_1 = arith.constant 0 : index
    %c0_2 = arith.constant 0 : index
    %2 = vector.load %arg1[%c0_1, %c0_2] : memref<32x32xbf16, #tpu.memory_space<vmem>>, vector<32x32xbf16>
    %cst = arith.constant dense<0.000000e+00> : vector<8x32xf32>
    %3 = tpu.matmul %1, %2, %cst {dimension_numbers = #tpu.dot_dimension_numbers<[1], [0], [0], [1], [0, 0, 1, 1], [], []>} : vector<8x32xbf16>, vector<32x32xbf16>, vector<8x32xf32> -> vector<8x32xf32>
    %c0_3 = arith.constant 0 : index
    %c0_4 = arith.constant 0 : index
    %4 = vector.load %arg2[%c0_3, %c0_4] : memref<1x32xf32, #tpu.memory_space<vmem>>, vector<1x32xf32>
    %5 = vector.broadcast %4 : vector<1x32xf32> to vector<8x32xf32>
    %6 = arith.addf %3, %5 : vector<8x32xf32>
    %cst_5 = arith.constant dense<0.000000e+00> : vector<32xf32>
    %7 = vector.multi_reduction <add>, %6, %cst_5 [0] : vector<8x32xf32> to vector<32xf32>
    %8 = vector.shape_cast %7 : vector<32xf32> to vector<1x32xf32>
    %cst_6 = arith.constant 1.250000e-01 : f32
    %9 = vector.broadcast %cst_6 : f32 to vector<1x32xf32>
    %10 = arith.mulf %8, %9 : vector<1x32xf32>
    %11 = vector.broadcast %10 : vector<1x32xf32> to vector<8x32xf32>
    %12 = arith.subf %6, %11 : vector<8x32xf32>
    %13 = arith.mulf %12, %12 : vector<8x32xf32>
    %cst_7 = arith.constant dense<0.000000e+00> : vector<32xf32>
    %14 = vector.multi_reduction <add>, %13, %cst_7 [0] : vector<8x32xf32> to vector<32xf32>
    %15 = vector.shape_cast %14 : vector<32xf32> to vector<1x32xf32>
    %cst_8 = arith.constant 1.250000e-01 : f32
    %16 = vector.broadcast %cst_8 : f32 to vector<1x32xf32>
    %17 = arith.mulf %15, %16 : vector<1x32xf32>
    %cst_9 = arith.constant 9.99999974E-6 : f32
    %18 = vector.broadcast %cst_9 : f32 to vector<1x32xf32>
    %19 = arith.addf %17, %18 : vector<1x32xf32>
    %20 = math.rsqrt %19 : vector<1x32xf32>
    %21 = vector.broadcast %20 : vector<1x32xf32> to vector<8x32xf32>
    %22 = arith.mulf %12, %21 : vector<8x32xf32>
    %c0_10 = arith.constant 0 : index
    %c0_11 = arith.constant 0 : index
    %23 = vector.load %arg3[%c0_10, %c0_11] : memref<1x32xf32, #tpu.memory_space<vmem>>, vector<1x32xf32>
    %24 = vector.broadcast %23 : vector<1x32xf32> to vector<8x32xf32>
    %25 = arith.mulf %22, %24 : vector<8x32xf32>
    %c0_12 = arith.constant 0 : index
    %c0_13 = arith.constant 0 : index
    %26 = vector.load %arg4[%c0_12, %c0_13] : memref<1x32xf32, #tpu.memory_space<vmem>>, vector<1x32xf32>
    %27 = vector.broadcast %26 : vector<1x32xf32> to vector<8x32xf32>
    %28 = arith.addf %25, %27 : vector<8x32xf32>
    %cst_14 = arith.constant 0.000000e+00 : f32
    %29 = vector.broadcast %cst_14 : f32 to vector<8x32xf32>
    %30 = arith.maximumf %28, %29 : vector<8x32xf32>
    %31 = arith.truncf %30 : vector<8x32xf32> to vector<8x32xbf16>
    %c0_15 = arith.constant 0 : index
    %c0_16 = arith.constant 0 : index
    %32 = vector.load %arg5[%c0_15, %c0_16] : memref<8x32xbf16, #tpu.memory_space<vmem>>, vector<8x32xbf16>
    tpu.vector_store %arg5[%c0_15, %c0_16], %31 {strides = array<i32>} : memref<8x32xbf16, #tpu.memory_space<vmem>>, vector<8x32xbf16>,
    return
  }
}

module attributes {stable_mosaic.version = 11 : i64} {
  func.func @_heads_kernel(%arg0: i32, %arg1: i32, %arg2: memref<8x32xbf16, #tpu.memory_space<vmem>>, %arg3: memref<1x32x384xbf16, #tpu.memory_space<vmem>>, %arg4: memref<1x1x384xf32, #tpu.memory_space<vmem>>, %arg5: memref<8x128xf32, #tpu.memory_space<vmem>>, %arg6: memref<8x128xf32, #tpu.memory_space<vmem>>, %arg7: memref<8x128xf32, #tpu.memory_space<vmem>>) attributes {dimension_semantics = [#tpu.dimension_semantics<parallel>, #tpu.dimension_semantics<parallel>], iteration_bounds = array<i64: 1, 1>, scalar_prefetch = 0 : i64, scratch_operands = 0 : i64, tpu.core_type = #tpu.core_type<tc>, window_params = [{transform_indices = @transform_0, window_bounds = array<i64: 8, 32>}, {transform_indices = @transform_1, window_bounds = array<i64: 1, 32, 384>}, {transform_indices = @transform_2, window_bounds = array<i64: 1, 1, 384>}, {transform_indices = @transform_3, window_bounds = array<i64: 8, 128>}, {transform_indices = @transform_4, window_bounds = array<i64: 8, 128>}, {transform_indices = @transform_5, window_bounds = array<i64: 8, 128>}]} {
    %c0 = arith.constant 0 : index
    %c0_0 = arith.constant 0 : index
    %0 = vector.load %arg2[%c0, %c0_0] : memref<8x32xbf16, #tpu.memory_space<vmem>>, vector<8x32xbf16>
    %c0_1 = arith.constant 0 : index
    %c0_2 = arith.constant 0 : index
    %c0_3 = arith.constant 0 : index
    %1 = vector.load %arg3[%c0_1, %c0_2, %c0_3] : memref<1x32x384xbf16, #tpu.memory_space<vmem>>, vector<1x32x384xbf16>
    %2 = vector.shape_cast %1 : vector<1x32x384xbf16> to vector<32x384xbf16>
    %cst = arith.constant dense<0.000000e+00> : vector<8x384xf32>
    %3 = tpu.matmul %0, %2, %cst {dimension_numbers = #tpu.dot_dimension_numbers<[1], [0], [0], [1], [0, 0, 1, 1], [], []>} : vector<8x32xbf16>, vector<32x384xbf16>, vector<8x384xf32> -> vector<8x384xf32>
    %c0_4 = arith.constant 0 : index
    %c0_5 = arith.constant 0 : index
    %c0_6 = arith.constant 0 : index
    %4 = vector.load %arg4[%c0_4, %c0_5, %c0_6] : memref<1x1x384xf32, #tpu.memory_space<vmem>>, vector<1x1x384xf32>
    %5 = vector.shape_cast %4 : vector<1x1x384xf32> to vector<1x384xf32>
    %6 = vector.broadcast %5 : vector<1x384xf32> to vector<8x384xf32>
    %7 = arith.addf %3, %6 : vector<8x384xf32>
    %8 = vector.extract_strided_slice %7 {offsets = [0, 0], sizes = [8, 128], strides = [1, 1]} : vector<8x384xf32> to vector<8x128xf32>
    %9 = vector.extract_strided_slice %7 {offsets = [0, 128], sizes = [8, 128], strides = [1, 1]} : vector<8x384xf32> to vector<8x128xf32>
    %10 = vector.extract_strided_slice %7 {offsets = [0, 256], sizes = [8, 128], strides = [1, 1]} : vector<8x384xf32> to vector<8x128xf32>
    %cst_7 = arith.constant 5.000000e-01 : f32
    %11 = vector.broadcast %cst_7 : f32 to vector<8x128xf32>
    %12 = arith.mulf %11, %8 : vector<8x128xf32>
    %13 = math.tanh %12 : vector<8x128xf32>
    %cst_8 = arith.constant 1.000000e+00 : f32
    %14 = vector.broadcast %cst_8 : f32 to vector<8x128xf32>
    %15 = arith.addf %13, %14 : vector<8x128xf32>
    %cst_9 = arith.constant 5.000000e-01 : f32
    %16 = vector.broadcast %cst_9 : f32 to vector<8x128xf32>
    %17 = arith.mulf %16, %15 : vector<8x128xf32>
    %c0_10 = arith.constant 0 : index
    %c0_11 = arith.constant 0 : index
    %18 = vector.load %arg5[%c0_10, %c0_11] : memref<8x128xf32, #tpu.memory_space<vmem>>, vector<8x128xf32>
    tpu.vector_store %arg5[%c0_10, %c0_11], %17 {strides = array<i32>} : memref<8x128xf32, #tpu.memory_space<vmem>>, vector<8x128xf32>,
    %cst_12 = arith.constant 2.000000e+01 : f32
    %19 = vector.broadcast %cst_12 : f32 to vector<8x128xf32>
    %20 = arith.cmpf ogt, %9, %19 : vector<8x128xf32>
    %cst_13 = arith.constant 2.000000e+01 : f32
    %21 = vector.broadcast %cst_13 : f32 to vector<8x128xf32>
    %22 = arith.minimumf %9, %21 : vector<8x128xf32>
    %23 = math.exp %22 : vector<8x128xf32>
    %24 = math.log1p %23 : vector<8x128xf32>
    %25 = arith.select %20, %9, %24 : vector<8x128xi1>, vector<8x128xf32>
    %cst_14 = arith.constant 9.99999974E-5 : f32
    %cst_15 = arith.constant 1.000000e+04 : f32
    %26 = vector.broadcast %cst_14 : f32 to vector<8x128xf32>
    %27 = arith.maximumf %26, %25 : vector<8x128xf32>
    %28 = vector.broadcast %cst_15 : f32 to vector<8x128xf32>
    %29 = arith.minimumf %28, %27 : vector<8x128xf32>
    %c0_16 = arith.constant 0 : index
    %c0_17 = arith.constant 0 : index
    %30 = vector.load %arg6[%c0_16, %c0_17] : memref<8x128xf32, #tpu.memory_space<vmem>>, vector<8x128xf32>
    tpu.vector_store %arg6[%c0_16, %c0_17], %29 {strides = array<i32>} : memref<8x128xf32, #tpu.memory_space<vmem>>, vector<8x128xf32>,
    %31 = math.exp %10 : vector<8x128xf32>
    %cst_18 = arith.constant 9.99999974E-6 : f32
    %cst_19 = arith.constant 1.000000e+06 : f32
    %32 = vector.broadcast %cst_18 : f32 to vector<8x128xf32>
    %33 = arith.maximumf %32, %31 : vector<8x128xf32>
    %34 = vector.broadcast %cst_19 : f32 to vector<8x128xf32>
    %35 = arith.minimumf %34, %33 : vector<8x128xf32>
    %c0_20 = arith.constant 0 : index
    %c0_21 = arith.constant 0 : index
    %36 = vector.load %arg7[%c0_20, %c0_21] : memref<8x128xf32, #tpu.memory_space<vmem>>, vector<8x128xf32>
    tpu.vector_store %arg7[%c0_20, %c0_21], %35 {strides = array<i32>} : memref<8x128xf32, #tpu.memory_space<vmem>>, vector<8x128xf32>,
    return
  }
  func.func @transform_0(%arg0: i32, %arg1: i32) -> (i32, i32) {
    %c0_i32 = arith.constant 0 : i32
    %c0_i32_0 = arith.constant 0 : i32
    return %arg0, %c0_i32 : i32, i32
  }
  func.func @transform_1(%arg0: i32, %arg1: i32) -> (i32, i32, i32) {
    %c0_i32 = arith.constant 0 : i32
    %c0_i32_0 = arith.constant 0 : i32
    %c0_i32_1 = arith.constant 0 : i32
    return %arg1, %c0_i32, %c0_i32_0 : i32, i32, i32
  }
  func.func @transform_2(%arg0: i32, %arg1: i32) -> (i32, i32, i32) {
    %c0_i32 = arith.constant 0 : i32
    %c0_i32_0 = arith.constant 0 : i32
    %c0_i32_1 = arith.constant 0 : i32
    return %arg1, %c0_i32, %c0_i32_0 : i32, i32, i32
  }
  func.func @transform_3(%arg0: i32, %arg1: i32) -> (i32, i32) {
    %c0_i32 = arith.constant 0 : i32
    return %arg0, %arg1 : i32, i32
  }
  func.func @transform_4(%arg0: i32, %arg1: i32) -> (i32, i32) {
    %c0_i32 = arith.constant 0 : i32
    return %arg0, %arg1 : i32, i32
  }
  func.func @transform_5(%arg0: i32, %arg1: i32) -> (i32, i32) {
    %c0_i32 = arith.constant 0 : i32
    return %arg0, %arg1 : i32, i32
  }
}

</mosaic_0001>

<llo_original>
// kernel: decoder_forward.2
$region0: #{decoder_forward.2}
  #allocation0 [shape = 'u32[]', space=smem, size = 0x4, offset = 0x4, fixed_abs, tag = 'smem constant byte address 0x4 - core index']
  #allocation1 [shape = 'u32[144,128]{1,0:T(1,128)}', space=vmem, size = 0x12000, scoped, tag = 'internal scratch']
  %s0 = inlined_call_operand.hbm [shape: f32[8,32], index: 0, kind: input, shape index: {}]
  %s1 = inlined_call_operand.hbm [shape: bf16[32,32], index: 1, kind: input, shape index: {}]
  %s2 = inlined_call_operand.vmem [shape: f32[1,32], index: 2, kind: input, shape index: {}]
  %s3 = inlined_call_operand.vmem [shape: f32[1,32], index: 3, kind: input, shape index: {}]
  %s4 = inlined_call_operand.vmem [shape: f32[1,32], index: 4, kind: input, shape index: {}]
  %s5 = inlined_call_operand.vmem [shape: bf16[8,32], index: 5, kind: output, shape index: {}]
  %s6 = sld [smem:[#allocation0]]
  $region38: #{decoder_forward.2} parent=0
    _
  %s8 = ssub.s32 1, %s6
  %s9 = scalar_select 0, %s8, %s6
  $region1: #{decoder_forward.2} parent=0
    #allocation2 [shape = 'u8[4096]{0}', space=vmem, size = 0x1000, scoped, tag = 'input window, operand 0, single buffered']
    #allocation3 [shape = 's32[1]{0}', space=sflag, size = 0x4, scoped, tag = 'scoped memory for decoder_forward.2']
    #allocation4 [shape = 'u8[8192]{0}', space=vmem, size = 0x2000, scoped, tag = 'input window, operand 1, single buffered']
    #allocation5 [shape = 's32[1]{0}', space=sflag, size = 0x4, scoped, tag = 'scoped memory for decoder_forward.2']
    %10 = vsyncpa [#allocation3], 0
    %11 = vsyncpa [#allocation5], 0
    // Predicated region
    $region2: #{decoder_forward.2} parent=1 // pred_check
      _
    $region3: #{decoder_forward.2} parent=1 // pred_check_branch
      %13 = sbr.rel (0) target = $region5
    $region4: #{decoder_forward.2} parent=1 // pred_region
      %s15 = ssub.s32 128, 128
      %16 = vsyncadd [#allocation3], %s15
      %s18 = sshll.u32 [#allocation2], 4
      %s19 = int_to_ptr.vmem [resolvable:$true] %s18
      %21 = dma.hbm_to_vmem [thread:$0]  %s0, 128, %s19, [#allocation3]
    $region5: #{decoder_forward.2} parent=1 // pred_fallthru
      _
    // Predicated region
    $region6: #{decoder_forward.2} parent=1 // pred_check
      _
    $region7: #{decoder_forward.2} parent=1 // pred_check_branch
      %23 = sbr.rel (0) target = $region9
    $region8: #{decoder_forward.2} parent=1 // pred_region
      %s25 = ssub.s32 256, 256
      %26 = vsyncadd [#allocation5], %s25
      %s27 = sshll.u32 [#allocation4], 4
      %s28 = int_to_ptr.vmem [resolvable:$true] %s27
      %33 = dma.hbm_to_vmem [thread:$0]  %s1, 256, %s28, [#allocation5], 64, 64, 4
    $region9: #{decoder_forward.2} parent=1 // pred_fallthru
      _
    // Predicated region
    $region10: #{decoder_forward.2} parent=1 // pred_check
      _
    $region11: #{decoder_forward.2} parent=1 // pred_check_branch
      %35 = sbr.rel (0) target = $region13
    $region12: #{decoder_forward.2} parent=1 // pred_region
      _
    $region13: #{decoder_forward.2} parent=1 // pred_fallthru
      _
    // Predicated region
    $region14: #{decoder_forward.2} parent=1 // pred_check
      _
    $region15: #{decoder_forward.2} parent=1 // pred_check_branch
      %37 = sbr.rel (0) target = $region17
    $region16: #{decoder_forward.2} parent=1 // pred_region
      _
    $region17: #{decoder_forward.2} parent=1 // pred_fallthru
      _
    // Predicated region
    $region18: #{decoder_forward.2} parent=1 // pred_check
      _
    $region19: #{decoder_forward.2} parent=1 // pred_check_branch
      %39 = sbr.rel (0) target = $region21
    $region20: #{decoder_forward.2} parent=1 // pred_region
      _
    $region21: #{decoder_forward.2} parent=1 // pred_fallthru
      _
    // Predicated region
    $region22: #{decoder_forward.2} parent=1 // pred_check
      _
    $region23: #{decoder_forward.2} parent=1 // pred_check_branch
      %41 = sbr.rel (0) target = $region25
    $region24: #{decoder_forward.2} parent=1 // pred_region
      %42 = dma.done [#allocation3], 128
    $region25: #{decoder_forward.2} parent=1 // pred_fallthru
      _
    // Predicated region
    $region26: #{decoder_forward.2} parent=1 // pred_check
      _
    $region27: #{decoder_forward.2} parent=1 // pred_check_branch
      %44 = sbr.rel (0) target = $region29
    $region28: #{decoder_forward.2} parent=1 // pred_region
      %45 = dma.done [#allocation5], 256
    $region29: #{decoder_forward.2} parent=1 // pred_fallthru
      _
    %v47 = vld [vmem:[#allocation2] sm:$0xff]
    %v48 = vpack.c.bf16 %v47, %v47
    %v49 = vld [vmem:[#allocation4] sm:$0xf]
    %v50 = vld [vmem:[#allocation4 + $0x4] sm:$0xf]
    %v51 = vld [vmem:[#allocation4 + $0x8] sm:$0xf]
    %v52 = vld [vmem:[#allocation4 + $0xc] sm:$0xf]
    %v53 = vld [vmem:[%s2] sm:$0x1]
    %v55 = vlaneseq
    %v56 = vshrl.u32 %v55, 7
    %v57 = vsub.s32 0, %v56
    %v58 = vrot.slane %v53, %v57
    %v64 = vunpack.c.l.b16 %v49
    %v65 = vunpack.c.l.b16 %v50
    %v66 = vunpack.c.l.b16 %v51
    %v67 = vunpack.c.l.b16 %v52
    %v68 = vpack.c.b16 %v65, %v64
    %v69 = vpack.c.b16 %v67, %v66
    %vm72 = vcmask 261120
    %v74 = vsel %vm72, %v48, 0
    %76 = vmatprep.subr.bf16.mxu0 0
    %77 = vmatpush1.bf16.msra.mxu0 0
    %78 = vmatprep.subr.bf16.mxu0 0
    %79 = vmatpush1.bf16.msra.mxu0 0
    %80 = vmatprep.subr.bf16.mxu0 0
    %81 = vmatpush1.bf16.msra.mxu0 0
    %82 = vmatprep.subr.bf16.mxu0 0
    %83 = vmatpush1.bf16.msra.mxu0 0
    %84 = vmatprep.subr.bf16.mxu0 0
    %85 = vmatpush1.bf16.msra.mxu0 0
    %86 = vmatprep.subr.bf16.mxu0 0
    %87 = vmatpush1.bf16.msra.mxu0 0
    %88 = vmatprep.subr.bf16.mxu0 0
    %89 = vmatpush1.bf16.msra.mxu0 %v69
    %90 = vmatprep.subr.bf16.mxu0 0
    %91 = vmatpush1.bf16.msra.mxu0 %v68
    %92 = vmatprep.subr.bf16.mxu0 0
    %93 = vmatpush2.bf16.msra.mxu0 0
    %94 = vmatprep.subr.bf16.mxu0 0
    %95 = vmatpush2.bf16.msra.mxu0 0
    %96 = vmatprep.subr.bf16.mxu0 0
    %97 = vmatpush2.bf16.msra.mxu0 0
    %98 = vmatprep.subr.bf16.mxu0 0
    %99 = vmatpush2.bf16.msra.mxu0 0
    %100 = vmatprep.subr.bf16.mxu0 0
    %101 = vmatpush2.bf16.msra.mxu0 0
    %102 = vmatprep.subr.bf16.mxu0 0
    %103 = vmatpush2.bf16.msra.mxu0 0
    %104 = vmatprep.subr.bf16.mxu0 0
    %105 = vmatpush2.bf16.msra.mxu0 0
    %106 = vmatprep.subr.bf16.mxu0 0
    %107 = vmatpush2.bf16.msra.mxu0 0
    %108 = vmatprep.mubr.bf16.mxu0 0
    %109 = vmatmul.mubr.bf16.gmra.mxu0 %v74
    %v110 = vpop.f32.mrf.mxu0
    %v111 = vadd.f32 %v58, %v110
    %v112 = vpop.f32.mrf.mxu0
    %v113 = vpop.f32.mrf.mxu0
    %v114 = vpop.f32.mrf.mxu0
    %115 = vdwg.mxu0
    %v116 = vsel %vm72, %v111, 0.0
    %v117 = vrot.slane %v116, 4
    %v118 = vadd.f32 %v116, %v117
    %v119 = vrot.slane %v118, 2
    %v120 = vadd.f32 %v118, %v119
    %v121 = vrot.slane %v120, 1
    %v122 = vadd.f32 %v120, %v121
    %v123 = vmul.f32 %v122, 0.125
    %v124 = vsub.f32 %v111, %v123
    %v125 = vmul.f32 %v124, %v124
    %v126 = vsel %vm72, %v125, 0.0
    %v127 = vrot.slane %v126, 4
    %v128 = vadd.f32 %v126, %v127
    %v129 = vrot.slane %v128, 2
    %v130 = vadd.f32 %v128, %v129
    %v131 = vrot.slane %v130, 1
    %v132 = vadd.f32 %v130, %v131
    %v133 = vmul.f32 %v132, 0.125
    %v134 = vadd.f32 %v133, 1e-05
    %v135 = vrsqrt.pop %v134
    %v136 = vmul.f32 %v124, %v135
    %v137 = vld [vmem:[%s3] sm:$0x1]
    %v139 = vlaneseq
    %v140 = vshrl.u32 %v139, 7
    %v141 = vsub.s32 0, %v140
    %v142 = vrot.slane %v137, %v141
    %v144 = vmul.f32 %v136, %v142
    %v145 = vld [vmem:[%s4] sm:$0x1]
    %v147 = vlaneseq
    %v148 = vshrl.u32 %v147, 7
    %v149 = vsub.s32 0, %v148
    %v150 = vrot.slane %v145, %v149
    %v152 = vadd.f32 %v144, %v150
    %v153 = vmax.f32 %v152, 0.0
    %v154 = vpack.c.bf16 %v153, %v153
    %vm155 = vcmask 257024
    %156 = vst.msk [vmem:[%s5] sm:$0xf] %vm155, %v154
    // Predicated region
    $region30: #{decoder_forward.2} parent=1 // pred_check
      _
    $region31: #{decoder_forward.2} parent=1 // pred_check_branch
      %158 = sbr.rel (0) target = $region33
    $region32: #{decoder_forward.2} parent=1 // pred_region
      _
    $region33: #{decoder_forward.2} parent=1 // pred_fallthru
      _
    // Predicated region
    $region34: #{decoder_forward.2} parent=1 // pred_check
      _
    $region35: #{decoder_forward.2} parent=1 // pred_check_branch
      %160 = sbr.rel (0) target = $region37
    $region36: #{decoder_forward.2} parent=1 // pred_region
      _
    $region37: #{decoder_forward.2} parent=1 // pred_fallthru
      _
    %161 = vsyncpa [#allocation3], 1
    %162 = vsyncpa [#allocation5], 1

// kernel: decoder_forward.3
$region0: #{decoder_forward.3}
  #allocation0 [shape = 'u32[]', space=smem, size = 0x4, offset = 0x4, fixed_abs, tag = 'smem constant byte address 0x4 - core index']
  #allocation1 [shape = 'u32[144,128]{1,0:T(1,128)}', space=vmem, size = 0x12000, scoped, tag = 'internal scratch']
  %s0 = inlined_call_operand.vmem [shape: bf16[8,32], index: 0, kind: input, shape index: {}]
  %s1 = inlined_call_operand.hbm [shape: bf16[1,32,384], index: 1, kind: input, shape index: {}]
  %s2 = inlined_call_operand.vmem [shape: f32[1,1,384], index: 2, kind: input, shape index: {}]
  %s3 = inlined_call_operand.hbm [shape: f32[8,16], index: 3, kind: output, shape index: {0}]
  %s4 = inlined_call_operand.hbm [shape: f32[8,16], index: 4, kind: output, shape index: {1}]
  %s5 = inlined_call_operand.hbm [shape: f32[8,16], index: 5, kind: output, shape index: {2}]
  %6 = xla_tuple %s3, %s4, %s5
  %s7 = sld [smem:[#allocation0]]
  $region42: #{decoder_forward.3} parent=0
    _
  %s9 = ssub.s32 1, %s7
  %s10 = scalar_select 0, %s9, %s7
  $region1: #{decoder_forward.3} parent=0
    #allocation2 [shape = 'u8[24576]{0}', space=vmem, size = 0x6000, scoped, tag = 'input window, operand 1, single buffered']
    #allocation3 [shape = 's32[1]{0}', space=sflag, size = 0x4, scoped, tag = 'scoped memory for decoder_forward.3']
    #allocation4 [shape = 's32[1]{0}', space=sflag, size = 0x4, scoped, tag = 'scoped memory for decoder_forward.3']
    #allocation5 [shape = 'u8[4096]{0}', space=vmem, size = 0x1000, scoped, tag = 'output window, operand 0, single buffered']
    #allocation6 [shape = 'u8[4096]{0}', space=vmem, size = 0x1000, scoped, tag = 'output window, operand 1, single buffered']
    #allocation7 [shape = 's32[1]{0}', space=sflag, size = 0x4, scoped, tag = 'scoped memory for decoder_forward.3']
    #allocation8 [shape = 'u8[4096]{0}', space=vmem, size = 0x1000, scoped, tag = 'output window, operand 2, single buffered']
    %11 = vsyncpa [#allocation3], 0
    %12 = vsyncpa [#allocation4], 0
    %13 = vsyncpa [#allocation7], 0
    // Predicated region
    $region2: #{decoder_forward.3} parent=1 // pred_check
      _
    $region3: #{decoder_forward.3} parent=1 // pred_check_branch
      %15 = sbr.rel (0) target = $region5
    $region4: #{decoder_forward.3} parent=1 // pred_region
      _
    $region5: #{decoder_forward.3} parent=1 // pred_fallthru
      _
    // Predicated region
    $region6: #{decoder_forward.3} parent=1 // pred_check
      _
    $region7: #{decoder_forward.3} parent=1 // pred_check_branch
      %17 = sbr.rel (0) target = $region9
    $region8: #{decoder_forward.3} parent=1 // pred_region
      %s19 = ssub.s32 768, 768
      %20 = vsyncadd [#allocation3], %s19
      %s21 = sshll.u32 [#allocation2], 4
      %s22 = int_to_ptr.vmem [resolvable:$true] %s21
      %27 = dma.hbm_to_vmem [thread:$0]  %s1, 768, %s22, [#allocation3], 192, 192, 12
    $region9: #{decoder_forward.3} parent=1 // pred_fallthru
      _
    // Predicated region
    $region10: #{decoder_forward.3} parent=1 // pred_check
      _
    $region11: #{decoder_forward.3} parent=1 // pred_check_branch
      %29 = sbr.rel (0) target = $region13
    $region12: #{decoder_forward.3} parent=1 // pred_region
      _
    $region13: #{decoder_forward.3} parent=1 // pred_fallthru
      _
    // Predicated region
    $region14: #{decoder_forward.3} parent=1 // pred_check
      _
    $region15: #{decoder_forward.3} parent=1 // pred_check_branch
      %31 = sbr.rel (0) target = $region17
    $region16: #{decoder_forward.3} parent=1 // pred_region
      %32 = dma.done [#allocation3], 768
    $region17: #{decoder_forward.3} parent=1 // pred_fallthru
      _
    %v34 = vld [vmem:[%s0] sm:$0xf]
    %v35 = vld [vmem:[#allocation2] sm:$0xff]
    %v36 = vld [vmem:[#allocation2 + $0x8] sm:$0xf]
    %v37 = vld [vmem:[#allocation2 + $0xc] sm:$0xff]
    %v38 = vld [vmem:[#allocation2 + $0x14] sm:$0xf]
    %v39 = vld [vmem:[#allocation2 + $0x18] sm:$0xff]
    %v40 = vld [vmem:[#allocation2 + $0x20] sm:$0xf]
    %v41 = vld [vmem:[#allocation2 + $0x24] sm:$0xff]
    %v42 = vld [vmem:[#allocation2 + $0x2c] sm:$0xf]
    %v43 = vld [vmem:[%s2] sm:$0x7]
    %v45 = vlaneseq
    %v46 = vshrl.u32 %v45, 7
    %v47 = vsub.s32 0, %v46
    %v48 = vrot.slane %v43, %v47
    %v49 = vlaneseq
    %v50 = vshrl.u32 %v49, 7
    %v51 = vsub.s32 1, %v50
    %v52 = vrot.slane %v43, %v51
    %v53 = vlaneseq
    %v54 = vshrl.u32 %v53, 7
    %v55 = vsub.s32 2, %v54
    %v56 = vrot.slane %v43, %v55
    %v68 = vunpack.c.l.b16 %v35
    %v69 = vunpack.c.h.b16 %v35
    %v70 = vunpack.c.l.b16 %v36
    %v71 = vunpack.c.l.b16 %v37
    %v72 = vunpack.c.h.b16 %v37
    %v73 = vunpack.c.l.b16 %v38
    %v74 = vunpack.c.l.b16 %v39
    %v75 = vunpack.c.h.b16 %v39
    %v76 = vunpack.c.l.b16 %v40
    %v77 = vunpack.c.l.b16 %v41
    %v78 = vunpack.c.h.b16 %v41
    %v79 = vunpack.c.l.b16 %v42
    %v80 = vpack.c.b16 %v71, %v68
    %v81 = vpack.c.b16 %v72, %v69
    %v82 = vpack.c.b16 %v73, %v70
    %v83 = vpack.c.b16 %v77, %v74
    %v84 = vpack.c.b16 %v78, %v75
    %v85 = vpack.c.b16 %v79, %v76
    %vm92 = vcmask 261120
    %v94 = vsel %vm92, %v34, 0
    %96 = vmatprep.subr.bf16.mxu0 0
    %97 = vmatpush1.bf16.msra.mxu0 0
    %98 = vmatprep.subr.bf16.mxu0 0
    %99 = vmatpush1.bf16.msra.mxu0 0
    %100 = vmatprep.subr.bf16.mxu0 0
    %101 = vmatpush1.bf16.msra.mxu0 0
    %102 = vmatprep.subr.bf16.mxu0 0
    %103 = vmatpush1.bf16.msra.mxu0 0
    %104 = vmatprep.subr.bf16.mxu0 0
    %105 = vmatpush1.bf16.msra.mxu0 0
    %106 = vmatprep.subr.bf16.mxu0 0
    %107 = vmatpush1.bf16.msra.mxu0 0
    %108 = vmatprep.subr.bf16.mxu0 %v84
    %109 = vmatpush1.bf16.msra.mxu0 %v83
    %110 = vmatprep.subr.bf16.mxu0 %v81
    %111 = vmatpush1.bf16.msra.mxu0 %v80
    %112 = vmatprep.subr.bf16.mxu0 0
    %113 = vmatpush2.bf16.msra.mxu0 0
    %114 = vmatprep.subr.bf16.mxu0 0
    %115 = vmatpush2.bf16.msra.mxu0 0
    %116 = vmatprep.subr.bf16.mxu0 0
    %117 = vmatpush2.bf16.msra.mxu0 0
    %118 = vmatprep.subr.bf16.mxu0 0
    %119 = vmatpush2.bf16.msra.mxu0 0
    %120 = vmatprep.subr.bf16.mxu0 0
    %121 = vmatpush2.bf16.msra.mxu0 0
    %122 = vmatprep.subr.bf16.mxu0 0
    %123 = vmatpush2.bf16.msra.mxu0 0
    %124 = vmatprep.subr.bf16.mxu0 0
    %125 = vmatpush2.bf16.msra.mxu0 0
    %126 = vmatprep.subr.bf16.mxu0 0
    %127 = vmatpush2.bf16.msra.mxu0 0
    %128 = vmatprep.mubr.bf16.mxu0 0
    %129 = vmatmul.mubr.bf16.gmra.mxu0 %v94
    %v130 = vpop.f32.mrf.mxu0
    %v131 = vadd.f32 %v48, %v130
    %v132 = vpop.f32.mrf.mxu0
    %v133 = vadd.f32 %v52, %v132
    %v134 = vpop.f32.mrf.mxu0
    %v135 = vpop.f32.mrf.mxu0
    %136 = vdwg.mxu0
    %137 = vmatprep.subr.bf16.mxu0 0
    %138 = vmatpush1.bf16.msra.mxu0 0
    %139 = vmatprep.subr.bf16.mxu0 0
    %140 = vmatpush1.bf16.msra.mxu0 0
    %141 = vmatprep.subr.bf16.mxu0 0
    %142 = vmatpush1.bf16.msra.mxu0 0
    %143 = vmatprep.subr.bf16.mxu0 0
    %144 = vmatpush1.bf16.msra.mxu0 0
    %145 = vmatprep.subr.bf16.mxu0 0
    %146 = vmatpush1.bf16.msra.mxu0 0
    %147 = vmatprep.subr.bf16.mxu0 0
    %148 = vmatpush1.bf16.msra.mxu0 0
    %149 = vmatprep.subr.bf16.mxu0 0
    %150 = vmatpush1.bf16.msra.mxu0 %v85
    %151 = vmatprep.subr.bf16.mxu0 0
    %152 = vmatpush1.bf16.msra.mxu0 %v82
    %153 = vmatprep.subr.bf16.mxu0 0
    %154 = vmatpush2.bf16.msra.mxu0 0
    %155 = vmatprep.subr.bf16.mxu0 0
    %156 = vmatpush2.bf16.msra.mxu0 0
    %157 = vmatprep.subr.bf16.mxu0 0
    %158 = vmatpush2.bf16.msra.mxu0 0
    %159 = vmatprep.subr.bf16.mxu0 0
    %160 = vmatpush2.bf16.msra.mxu0 0
    %161 = vmatprep.subr.bf16.mxu0 0
    %162 = vmatpush2.bf16.msra.mxu0 0
    %163 = vmatprep.subr.bf16.mxu0 0
    %164 = vmatpush2.bf16.msra.mxu0 0
    %165 = vmatprep.subr.bf16.mxu0 0
    %166 = vmatpush2.bf16.msra.mxu0 0
    %167 = vmatprep.subr.bf16.mxu0 0
    %168 = vmatpush2.bf16.msra.mxu0 0
    %169 = vmatprep.mubr.bf16.mxu0 0
    %170 = vmatmul.mubr.bf16.gmra.mxu0 %v94
    %v171 = vpop.f32.mrf.mxu0
    %v172 = vadd.f32 %v56, %v171
    %v173 = vpop.f32.mrf.mxu0
    %v174 = vpop.f32.mrf.mxu0
    %v175 = vpop.f32.mrf.mxu0
    %176 = vdwg.mxu0
    %v177 = vmul.f32 %v131, 0.5
    %v178 = vtanh.pop %v177
    %v179 = vadd.f32 %v178, 1.0
    %v180 = vmul.f32 %v179, 0.5
    %181 = vst [vmem:[#allocation5] sm:$0xff] %v180
    %vm182 = vcmp.gt.f32.partialorder %v133, 20.0
    %v183 = vmin.f32 %v133, 20.0
    %v184 = vmul.f32 %v183, 1.442695
    %v185 = vpow.pop %v184
    %v186 = vadd.f32 %v185, 1.0
    %v187 = vlog2.pop %v186
    %v188 = vmul.f32 %v187, 0.6931472
    %v189 = vmul.f32 -0.5, %v185
    %v190 = vadd.f32 %v189, 1.0
    %v191 = vmul.f32 %v190, %v185
    %v192 = vand.u32 2147483647, %v185
    %vm193 = vcmp.lt.f32.partialorder %v192, 0.0004427343
    %v194 = vsel %vm193, %v191, %v188
    %v195 = vsel %vm182, %v133, %v194
    %v196 = vmax.f32 %v195, 0.0001
    %v197 = vmin.f32 %v196, 10000.0
    %198 = vst [vmem:[#allocation6] sm:$0xff] %v197
    %v199 = vmul.f32 %v172, 1.442695
    %v200 = vpow.pop %v199
    %v201 = vmax.f32 %v200, 1e-05
    %v202 = vmin.f32 %v201, 1000000.0
    %203 = vst [vmem:[#allocation8] sm:$0xff] %v202
    // Predicated region
    $region18: #{decoder_forward.3} parent=1 // pred_check
      _
    $region19: #{decoder_forward.3} parent=1 // pred_check_branch
      %205 = sbr.rel (0) target = $region21
    $region20: #{decoder_forward.3} parent=1 // pred_region
      %s207 = ssub.s32 128, 128
      %208 = vsyncadd [#allocation4], %s207
      %s210 = sshll.u32 [#allocation5], 4
      %s211 = int_to_ptr.vmem [resolvable:$true] %s210
      %213 = dma.vmem_to_hbm [thread:$0]  %s211, 128, %s3, [#allocation4]
    $region21: #{decoder_forward.3} parent=1 // pred_fallthru
      _
    // Predicated region
    $region22: #{decoder_forward.3} parent=1 // pred_check
      _
    $region23: #{decoder_forward.3} parent=1 // pred_check_branch
      %215 = sbr.rel (0) target = $region25
    $region24: #{decoder_forward.3} parent=1 // pred_region
      %s217 = ssub.s32 128, 128
      %218 = vsyncadd [#allocation7], %s217
      %s220 = sshll.u32 [#allocation6], 4
      %s221 = int_to_ptr.vmem [resolvable:$true] %s220
      %223 = dma.vmem_to_hbm [thread:$0]  %s221, 128, %s4, [#allocation7]
    $region25: #{decoder_forward.3} parent=1 // pred_fallthru
      _
    // Predicated region
    $region26: #{decoder_forward.3} parent=1 // pred_check
      _
    $region27: #{decoder_forward.3} parent=1 // pred_check_branch
      %225 = sbr.rel (0) target = $region29
    $region28: #{decoder_forward.3} parent=1 // pred_region
      %s227 = ssub.s32 128, 128
      %228 = vsyncadd [#allocation7], %s227
      %s230 = sshll.u32 [#allocation8], 4
      %s231 = int_to_ptr.vmem [resolvable:$true] %s230
      %233 = dma.vmem_to_hbm [thread:$0]  %s231, 128, %s5, [#allocation7]
    $region29: #{decoder_forward.3} parent=1 // pred_fallthru
      _
    // Predicated region
    $region30: #{decoder_forward.3} parent=1 // pred_check
      _
    $region31: #{decoder_forward.3} parent=1 // pred_check_branch
      %235 = sbr.rel (0) target = $region33
    $region32: #{decoder_forward.3} parent=1 // pred_region
      %236 = dma.done [#allocation4], 128
    $region33: #{decoder_forward.3} parent=1 // pred_fallthru
      _
    // Predicated region
    $region34: #{decoder_forward.3} parent=1 // pred_check
      _
    $region35: #{decoder_forward.3} parent=1 // pred_check_branch
      %238 = sbr.rel (0) target = $region37
    $region36: #{decoder_forward.3} parent=1 // pred_region
      %239 = dma.done [#allocation7], 128
    $region37: #{decoder_forward.3} parent=1 // pred_fallthru
      _
    // Predicated region
    $region38: #{decoder_forward.3} parent=1 // pred_check
      _
    $region39: #{decoder_forward.3} parent=1 // pred_check_branch
      %241 = sbr.rel (0) target = $region41
    $region40: #{decoder_forward.3} parent=1 // pred_region
      %242 = dma.done [#allocation7], 128
    $region41: #{decoder_forward.3} parent=1 // pred_fallthru
      _
    %243 = vsyncpa [#allocation3], 1
    %244 = vsyncpa [#allocation4], 1
    %245 = vsyncpa [#allocation7], 1

</llo_original>
